<compile_context>
chip_gen: v6e
topology: v6e:2x2x1
jax: 0.10.0
libtpu: 0.0.40
codegen_flags: <defaults>
</compile_context>

<pallas_src>
import functools

import numpy as np
import jax
import jax.numpy as jnp
from jax.experimental import pallas as pl
from jax.experimental.pallas import tpu as pltpu


def _round_up(x, m):
    return ((x + m - 1) // m) * m


def _default_bf16_act():
    """bf16 VPU/EUP exists on v6e/v7x; fall back to f32 elementwise on older chips."""
    try:
        kind = jax.devices()[0].device_kind.lower()
    except Exception:
        return True
    return not any(t in kind for t in ("v2", "v3", "v4", "v5"))


def fnn_kernel(x_ref,
               w1_ref, b1_ref,
               w2_ref, b2_ref,
               w3_ref, b3_ref,
               w4_ref, b4_ref,
               o_ref, *, bf16_act):
    # Transposed layout: activations are [features, TB]; batch is on the lane axis.
    a = x_ref[...]  # [D_in, TB] bf16 (cast in the wrapper)

    def hidden(w_ref, b_ref, a):
        # [H_out, H_in] @ [H_in, TB] -> [H_out, TB], f32 accumulation on the MXU.
        h = jnp.dot(w_ref[...], a, preferred_element_type=jnp.float32)
        if bf16_act:
            # bf16 bias add + bf16 tanh (EUP bf16 path); result is already bf16
            # for the next dot -> no separate cast.
            return jnp.tanh(h.astype(jnp.bfloat16) + b_ref[...])
        # v5-class: f32 VPU/EUP only; cast once for the next MXU dot.
        return jnp.tanh(h + b_ref[...]).astype(jnp.bfloat16)

    y1 = hidden(w1_ref, b1_ref, a)
    y2 = hidden(w2_ref, b2_ref, y1)
    y3 = hidden(w3_ref, b3_ref, y2)

    # Final layer: no tanh (matches the module); f32 output, lane-dense [D_out, TB].
    o_ref[...] = (jnp.dot(w4_ref[...], y3, preferred_element_type=jnp.float32)
                  + b4_ref[...])


def fnn_forward(x, kparams, *, tb=1024, bf16_act=None):
    """x: [B, D_in] float32.  kparams: scale-folded, transposed params (see fold_scale)."""
    if bf16_act is None:
        bf16_act = _default_bf16_act()

    B, D_in = x.shape
    H = kparams["w1"].shape[0]
    D_out = kparams["w4"].shape[0]

    # Cast + transpose in the wrapper: bf16 halves x's HBM traffic, and the kernel
    # truncates to bf16 anyway, so numerics are unchanged.
    x_t = x.T.astype(jnp.bfloat16)                      # [D_in, B]

    # Batch tile on the lane axis: multiple of 128.  Sized for grid-overhead
    # amortization / vreg pressure (sweep 256/512/1024), not MXU width.
    TB = min(tb, _round_up(B, 128))
    # v7x has 2 TensorCores: keep >= 2 grid steps so the "parallel" axis actually
    # splits the work.  (Switch to pltpu.CORE_PARALLEL if a profile shows a TC idle.)
    if pl.cdiv(B, TB) < 2 and TB > 128:
        TB = _round_up(TB // 2, 128)
    grid = (pl.cdiv(B, TB),)                            # partial last block: reads are
                                                        # undefined, writes are masked;
                                                        # batch columns are independent.

    x_spec = pl.BlockSpec((D_in, TB), lambda i: (0, i))
    out_spec = pl.BlockSpec((D_out, TB), lambda i: (0, i))

    def resident(arr):
        # Weights/biases: full-array block, constant index_map -> fetched once,
        # VMEM-resident across all grid steps (a few KB total).
        shape = arr.shape
        return pl.BlockSpec(shape, lambda i: (0,) * len(shape))

    # Advisory cost estimate so XLA schedules the wrapper transpose/cast around the call.
    flops = 2 * B * (D_in * H + 2 * H * H + H * D_out)
    transcendentals = 3 * B * H
    param_bytes = sum(int(v.size) * v.dtype.itemsize for v in kparams.values())
    bytes_accessed = int(x_t.size) * 2 + B * D_out * 4 + param_bytes

    out_t = pl.pallas_call(
        functools.partial(fnn_kernel, bf16_act=bf16_act),
        out_shape=jax.ShapeDtypeStruct((D_out, B), jnp.float32),
        grid=grid,
        in_specs=[
            x_spec,
            resident(kparams["w1"]), resident(kparams["b1"]),
            resident(kparams["w2"]), resident(kparams["b2"]),
            resident(kparams["w3"]), resident(kparams["b3"]),
            resident(kparams["w4"]), resident(kparams["b4"]),
        ],
        out_specs=out_spec,
        compiler_params=pltpu.CompilerParams(
            dimension_semantics=("parallel",)),
        cost_estimate=pl.CostEstimate(
            flops=flops, transcendentals=transcendentals,
            bytes_accessed=bytes_accessed),
    )(
        x_t,
        kparams["w1"], kparams["b1"],
        kparams["w2"], kparams["b2"],
        kparams["w3"], kparams["b3"],
        kparams["w4"], kparams["b4"],
    )
    return out_t.T                                       # [B, D_out]


def init_params(key, D_in, H, D_out):
    """Mirror the PyTorch module's init (Linear weight [out,in] stored transposed as [in,out])."""
    ks = jax.random.split(key, 8)
    w1 = jax.random.normal(ks[0], (D_in, H), jnp.float32) * np.sqrt(2.0 / (D_in + H))
    w2 = jax.random.normal(ks[1], (H, H), jnp.float32) * np.sqrt(2.0 / (H + H))
    w3 = jax.random.normal(ks[2], (H, H), jnp.float32) * np.sqrt(2.0 / (H + H))
    w4 = jax.random.normal(ks[3], (H, D_out), jnp.float32) * np.sqrt(2.0 / (H + D_out))
    b1 = jax.random.normal(ks[4], (1, H), jnp.float32)
    b2 = jax.random.normal(ks[5], (1, H), jnp.float32)
    b3 = jax.random.normal(ks[6], (1, H), jnp.float32)
    b4 = jax.random.normal(ks[7], (1, D_out), jnp.float32)
    return {"w1": w1, "b1": b1, "w2": w2, "b2": b2,
            "w3": w3, "b3": b3, "w4": w4, "b4": b4}


def fold_scale(params, scale, *, bf16_act):
    """One-time host fold + transpose for the lane-on-batch kernel layout.

    tanh(s*(xW+b)) == tanh(x(sW)+sb); last layer likewise.
    Weights -> [out, in] bf16 (MXU).  Hidden biases -> [out, 1] in the elementwise
    dtype (bf16 on v6e/v7x, f32 on v5-class); last bias stays f32 (added after f32 acc).
    """
    s = jnp.float32(scale)
    hid_b_dtype = jnp.bfloat16 if bf16_act else jnp.float32
    out = {}
    for i in (1, 2, 3, 4):
        out[f"w{i}"] = (s * params[f"w{i}"]).T.astype(jnp.bfloat16)      # [out, in]
        b_dtype = hid_b_dtype if i < 4 else jnp.float32
        out[f"b{i}"] = (s * params[f"b{i}"]).T.astype(b_dtype)           # [out, 1]
    return out


def reference_forward_exact(x, kparams, bf16_act):
    """Pure-JAX mirror of the kernel math (transposed layout, bf16 dots, f32 accumulate)."""
    a = x.T.astype(jnp.bfloat16)
    for i in (1, 2, 3):
        h = jnp.dot(kparams[f"w{i}"], a, preferred_element_type=jnp.float32)
        if bf16_act:
            a = jnp.tanh(h.astype(jnp.bfloat16) + kparams[f"b{i}"])
        else:
            a = jnp.tanh(h + kparams[f"b{i}"]).astype(jnp.bfloat16)
    y = jnp.dot(kparams["w4"], a, preferred_element_type=jnp.float32) + kparams["b4"]
    return y.T


def reference_forward_f32(x, params, scale_val):
    """Module-semantics reference in full f32 (loose sanity check)."""
    s = scale_val
    y1 = jnp.tanh(s * (x @ params["w1"] + params["b1"]))
    y2 = jnp.tanh(s * (y1 @ params["w2"] + params["b2"]))
    y3 = jnp.tanh(s * (y2 @ params["w3"] + params["b3"]))
    return s * (y3 @ params["w4"] + params["b4"])


if __name__ == "__main__":
    # Shapes implied by the module's typical use: D_in=2, H=32, D_out=1.  Batch sized
    # to exercise a multi-step grid (2 steps of TB=256) while staying tiny.
    D_in, H, D_out = 2, 32, 1
    B = 512

    key = jax.random.PRNGKey(0)
    pkey, xkey = jax.random.split(key)
    params = init_params(pkey, D_in, H, D_out)

    # a1 = 0.2, n = 1 / a1  -> scale = n * a1 (computed faithfully, then folded;
    # numerically it's exactly 1.0 here, so the fold is a no-op in value).
    a1 = jnp.float32(0.2)
    n = jnp.float32(1.0) / a1
    scale = float(n * a1)

    bf16_act = _default_bf16_act()
    kparams = fold_scale(params, scale, bf16_act=bf16_act)

    x = jax.random.normal(xkey, (B, D_in), jnp.float32)

    y = fnn_forward(x, kparams, tb=1024, bf16_act=bf16_act)
    y = jax.block_until_ready(y)
    assert y.shape == (B, D_out)

    # Check vs. a pure-JAX mirror of the kernel math (tolerance covers bf16-tanh
    # implementation differences between XLA and the in-kernel EUP path).
    y_exact = reference_forward_exact(x, kparams, bf16_act)
    np.testing.assert_allclose(np.asarray(y), np.asarray(y_exact), rtol=3e-2, atol=3e-2)

    # Looser sanity check vs. full-f32 module semantics (bf16 weight/activation rounding).
    y_f32 = reference_forward_f32(x, params, scale)
    np.testing.assert_allclose(np.asarray(y), np.asarray(y_f32), rtol=7.5e-2, atol=7.5e-2)

    print("KERNEL_OK")
</pallas_src>

<mosaic_0001>
module attributes {stable_mosaic.version = 11 : i64} {
  func.func @fnn_kernel(%arg0: i32, %arg1: memref<2x256xbf16, #tpu.memory_space<vmem>>, %arg2: memref<32x2xbf16, #tpu.memory_space<vmem>>, %arg3: memref<32x1xbf16, #tpu.memory_space<vmem>>, %arg4: memref<32x32xbf16, #tpu.memory_space<vmem>>, %arg5: memref<32x1xbf16, #tpu.memory_space<vmem>>, %arg6: memref<32x32xbf16, #tpu.memory_space<vmem>>, %arg7: memref<32x1xbf16, #tpu.memory_space<vmem>>, %arg8: memref<1x32xbf16, #tpu.memory_space<vmem>>, %arg9: memref<1x1xf32, #tpu.memory_space<vmem>>, %arg10: memref<1x256xf32, #tpu.memory_space<vmem>>) attributes {dimension_semantics = [#tpu.dimension_semantics<parallel>], iteration_bounds = array<i64: 2>, scalar_prefetch = 0 : i64, scratch_operands = 0 : i64, tpu.core_type = #tpu.core_type<tc>, window_params = [{transform_indices = @transform_0, window_bounds = array<i64: 2, 256>}, {pipeline_mode = #tpu.pipeline_mode<synchronous>, transform_indices = @transform_1, window_bounds = array<i64: 32, 2>}, {pipeline_mode = #tpu.pipeline_mode<synchronous>, transform_indices = @transform_2, window_bounds = array<i64: 32, 1>}, {pipeline_mode = #tpu.pipeline_mode<synchronous>, transform_indices = @transform_3, window_bounds = array<i64: 32, 32>}, {pipeline_mode = #tpu.pipeline_mode<synchronous>, transform_indices = @transform_4, window_bounds = array<i64: 32, 1>}, {pipeline_mode = #tpu.pipeline_mode<synchronous>, transform_indices = @transform_5, window_bounds = array<i64: 32, 32>}, {pipeline_mode = #tpu.pipeline_mode<synchronous>, transform_indices = @transform_6, window_bounds = array<i64: 32, 1>}, {pipeline_mode = #tpu.pipeline_mode<synchronous>, transform_indices = @transform_7, window_bounds = array<i64: 1, 32>}, {pipeline_mode = #tpu.pipeline_mode<synchronous>, transform_indices = @transform_8, window_bounds = array<i64: 1, 1>}, {transform_indices = @transform_9, window_bounds = array<i64: 1, 256>}]} {
    %c0 = arith.constant 0 : index
    %c0_0 = arith.constant 0 : index
    %0 = vector.load %arg1[%c0, %c0_0] : memref<2x256xbf16, #tpu.memory_space<vmem>>, vector<2x256xbf16>
    %c0_1 = arith.constant 0 : index
    %c0_2 = arith.constant 0 : index
    %1 = vector.load %arg2[%c0_1, %c0_2] : memref<32x2xbf16, #tpu.memory_space<vmem>>, vector<32x2xbf16>
    %cst = arith.constant dense<0.000000e+00> : vector<32x256xf32>
    %2 = tpu.matmul %1, %0, %cst {dimension_numbers = #tpu.dot_dimension_numbers<[1], [0], [0], [1], [0, 0, 1, 1], [], []>} : vector<32x2xbf16>, vector<2x256xbf16>, vector<32x256xf32> -> vector<32x256xf32>
    %3 = arith.truncf %2 : vector<32x256xf32> to vector<32x256xbf16>
    %c0_3 = arith.constant 0 : index
    %c0_4 = arith.constant 0 : index
    %4 = vector.load %arg3[%c0_3, %c0_4] : memref<32x1xbf16, #tpu.memory_space<vmem>>, vector<32x1xbf16>
    %5 = vector.broadcast %4 : vector<32x1xbf16> to vector<32x256xbf16>
    %6 = arith.addf %3, %5 : vector<32x256xbf16>
    %7 = math.tanh %6 : vector<32x256xbf16>
    %c0_5 = arith.constant 0 : index
    %c0_6 = arith.constant 0 : index
    %8 = vector.load %arg4[%c0_5, %c0_6] : memref<32x32xbf16, #tpu.memory_space<vmem>>, vector<32x32xbf16>
    %cst_7 = arith.constant dense<0.000000e+00> : vector<32x256xf32>
    %9 = tpu.matmul %8, %7, %cst_7 {dimension_numbers = #tpu.dot_dimension_numbers<[1], [0], [0], [1], [0, 0, 1, 1], [], []>} : vector<32x32xbf16>, vector<32x256xbf16>, vector<32x256xf32> -> vector<32x256xf32>
    %10 = arith.truncf %9 : vector<32x256xf32> to vector<32x256xbf16>
    %c0_8 = arith.constant 0 : index
    %c0_9 = arith.constant 0 : index
    %11 = vector.load %arg5[%c0_8, %c0_9] : memref<32x1xbf16, #tpu.memory_space<vmem>>, vector<32x1xbf16>
    %12 = vector.broadcast %11 : vector<32x1xbf16> to vector<32x256xbf16>
    %13 = arith.addf %10, %12 : vector<32x256xbf16>
    %14 = math.tanh %13 : vector<32x256xbf16>
    %c0_10 = arith.constant 0 : index
    %c0_11 = arith.constant 0 : index
    %15 = vector.load %arg6[%c0_10, %c0_11] : memref<32x32xbf16, #tpu.memory_space<vmem>>, vector<32x32xbf16>
    %cst_12 = arith.constant dense<0.000000e+00> : vector<32x256xf32>
    %16 = tpu.matmul %15, %14, %cst_12 {dimension_numbers = #tpu.dot_dimension_numbers<[1], [0], [0], [1], [0, 0, 1, 1], [], []>} : vector<32x32xbf16>, vector<32x256xbf16>, vector<32x256xf32> -> vector<32x256xf32>
    %17 = arith.truncf %16 : vector<32x256xf32> to vector<32x256xbf16>
    %c0_13 = arith.constant 0 : index
    %c0_14 = arith.constant 0 : index
    %18 = vector.load %arg7[%c0_13, %c0_14] : memref<32x1xbf16, #tpu.memory_space<vmem>>, vector<32x1xbf16>
    %19 = vector.broadcast %18 : vector<32x1xbf16> to vector<32x256xbf16>
    %20 = arith.addf %17, %19 : vector<32x256xbf16>
    %21 = math.tanh %20 : vector<32x256xbf16>
    %c0_15 = arith.constant 0 : index
    %c0_16 = arith.constant 0 : index
    %22 = vector.load %arg8[%c0_15, %c0_16] : memref<1x32xbf16, #tpu.memory_space<vmem>>, vector<1x32xbf16>
    %cst_17 = arith.constant dense<0.000000e+00> : vector<1x256xf32>
    %23 = tpu.matmul %22, %21, %cst_17 {dimension_numbers = #tpu.dot_dimension_numbers<[1], [0], [0], [1], [0, 0, 1, 1], [], []>} : vector<1x32xbf16>, vector<32x256xbf16>, vector<1x256xf32> -> vector<1x256xf32>
    %c0_18 = arith.constant 0 : index
    %c0_19 = arith.constant 0 : index
    %24 = vector.load %arg9[%c0_18, %c0_19] : memref<1x1xf32, #tpu.memory_space<vmem>>, vector<1x1xf32>
    %25 = vector.broadcast %24 : vector<1x1xf32> to vector<1x256xf32>
    %26 = arith.addf %23, %25 : vector<1x256xf32>
    %c0_20 = arith.constant 0 : index
    %c0_21 = arith.constant 0 : index
    %27 = vector.load %arg10[%c0_20, %c0_21] : memref<1x256xf32, #tpu.memory_space<vmem>>, vector<1x256xf32>
    tpu.vector_store %arg10[%c0_20, %c0_21], %26 {strides = array<i32>} : memref<1x256xf32, #tpu.memory_space<vmem>>, vector<1x256xf32>,
    return
  }
  func.func @transform_0(%arg0: i32) -> (i32, i32) {
    %c0_i32 = arith.constant 0 : i32
    %c0_i32_0 = arith.constant 0 : i32
    return %c0_i32, %arg0 : i32, i32
  }
  func.func @transform_1(%arg0: i32) -> (i32, i32) {
    %c0_i32 = arith.constant 0 : i32
    %c0_i32_0 = arith.constant 0 : i32
    %c0_i32_1 = arith.constant 0 : i32
    return %c0_i32, %c0_i32_0 : i32, i32
  }
  func.func @transform_2(%arg0: i32) -> (i32, i32) {
    %c0_i32 = arith.constant 0 : i32
    %c0_i32_0 = arith.constant 0 : i32
    %c0_i32_1 = arith.constant 0 : i32
    return %c0_i32, %c0_i32_0 : i32, i32
  }
  func.func @transform_3(%arg0: i32) -> (i32, i32) {
    %c0_i32 = arith.constant 0 : i32
    %c0_i32_0 = arith.constant 0 : i32
    %c0_i32_1 = arith.constant 0 : i32
    return %c0_i32, %c0_i32_0 : i32, i32
  }
  func.func @transform_4(%arg0: i32) -> (i32, i32) {
    %c0_i32 = arith.constant 0 : i32
    %c0_i32_0 = arith.constant 0 : i32
    %c0_i32_1 = arith.constant 0 : i32
    return %c0_i32, %c0_i32_0 : i32, i32
  }
  func.func @transform_5(%arg0: i32) -> (i32, i32) {
    %c0_i32 = arith.constant 0 : i32
    %c0_i32_0 = arith.constant 0 : i32
    %c0_i32_1 = arith.constant 0 : i32
    return %c0_i32, %c0_i32_0 : i32, i32
  }
  func.func @transform_6(%arg0: i32) -> (i32, i32) {
    %c0_i32 = arith.constant 0 : i32
    %c0_i32_0 = arith.constant 0 : i32
    %c0_i32_1 = arith.constant 0 : i32
    return %c0_i32, %c0_i32_0 : i32, i32
  }
  func.func @transform_7(%arg0: i32) -> (i32, i32) {
    %c0_i32 = arith.constant 0 : i32
    %c0_i32_0 = arith.constant 0 : i32
    %c0_i32_1 = arith.constant 0 : i32
    return %c0_i32, %c0_i32_0 : i32, i32
  }
  func.func @transform_8(%arg0: i32) -> (i32, i32) {
    %c0_i32 = arith.constant 0 : i32
    %c0_i32_0 = arith.constant 0 : i32
    %c0_i32_1 = arith.constant 0 : i32
    return %c0_i32, %c0_i32_0 : i32, i32
  }
  func.func @transform_9(%arg0: i32) -> (i32, i32) {
    %c0_i32 = arith.constant 0 : i32
    %c0_i32_0 = arith.constant 0 : i32
    return %c0_i32, %arg0 : i32, i32
  }
}

</mosaic_0001>

<llo_original>
// kernel: tpu_custom_call.1
$region0: #{tpu_custom_call.1}
  #allocation0 [shape = 'u32[]', space=smem, size = 0x4, offset = 0x4, fixed_abs, tag = 'smem constant byte address 0x4 - core index']
  #allocation1 [shape = 'u32[144,128]{1,0:T(1,128)}', space=vmem, size = 0x12000, scoped, tag = 'internal scratch']
  #allocation2 [shape = 'f32[1,1]{1,0:T(1,128)S(1)}', space=vmem, size = 0x200, scoped, tag = 'scoped memory for tpu_custom_call.1']
  %s0 = inlined_call_operand.vmem [shape: bf16[2,512], index: 0, kind: input, shape index: {}]
  %s1 = inlined_call_operand.vmem [shape: bf16[32,2], index: 1, kind: input, shape index: {}]
  %s2 = inlined_call_operand.vmem [shape: bf16[32,1], index: 2, kind: input, shape index: {}]
  %s3 = inlined_call_operand.vmem [shape: bf16[32,32], index: 3, kind: input, shape index: {}]
  %s4 = inlined_call_operand.vmem [shape: bf16[32,1], index: 4, kind: input, shape index: {}]
  %s5 = inlined_call_operand.vmem [shape: bf16[32,32], index: 5, kind: input, shape index: {}]
  %s6 = inlined_call_operand.vmem [shape: bf16[32,1], index: 6, kind: input, shape index: {}]
  %s7 = inlined_call_operand.vmem [shape: bf16[1,32], index: 7, kind: input, shape index: {}]
  %s8 = inlined_call_operand.<no memory space> [shape: f32[1,1], index: 8, kind: input, shape index: {}]
  %s9 = inlined_call_operand.hbm [shape: f32[1,512], index: 9, kind: output, shape index: {}]
  %s10 = sld [smem:[#allocation0]]
  $region69: #{tpu_custom_call.1} parent=0
    _
  %s12 = ssub.s32 1, %s10
  %s13 = scalar_select 0, %s12, %s10
  %v14 = vstv %s8
  %15 = vst [vmem:[#allocation2] sm:$0x1] %v14
  $region1: #{tpu_custom_call.1} parent=0
    #allocation3 [shape = 'u8[2048]{0}', space=vmem, size = 0x800, scoped, tag = 'output window, operand 0']
    #allocation4 [shape = 's32[2]{0}', space=sflag, size = 0x8, scoped, tag = 'scoped memory for tpu_custom_call.1']
    %16 = vsyncpa [#allocation4], 0
    %s17 = scalar_lea.sflag [#allocation4], 1
    %18 = vsyncpa %s17, 0
    loop: start=0, step=1, limit=4
    $region2: #{tpu_custom_call.1} parent=1 // loop_pre_header
      _
    $region3: #{tpu_custom_call.1} parent=1 // loop_header
      %s20 = sphi 0, %s24
      %p21 = scmp.ge.s32.totalorder %s20, 4
      %s30 = sphi 0, %s32
      %s33 = sphi 0, %s30
      %s34 = sphi 0, %s33
      %s50 = sphi 0, %s34
      %s54 = sphi 0, %s54
      %s56 = sphi 0, %s54
      %s57 = sphi 0, %s56
      %s71 = sphi 0, %s57
      %s75 = sphi 0, %s75
      %s77 = sphi 0, %s75
      %s78 = sphi 0, %s77
      %s92 = sphi 0, %s78
      %s96 = sphi 0, %s96
      %s98 = sphi 0, %s96
      %s99 = sphi 0, %s98
      %s113 = sphi 0, %s99
      %s117 = sphi 0, %s117
      %s119 = sphi 0, %s117
      %s120 = sphi 0, %s119
      %s134 = sphi 0, %s120
      %s138 = sphi 0, %s138
      %s140 = sphi 0, %s138
      %s141 = sphi 0, %s140
      %s155 = sphi 0, %s141
      %s159 = sphi 0, %s159
      %s161 = sphi 0, %s159
      %s162 = sphi 0, %s161
      %s176 = sphi 0, %s162
      %s180 = sphi 0, %s180
      %s182 = sphi 0, %s180
      %s183 = sphi 0, %s182
      %s197 = sphi 0, %s183
      %s201 = sphi 0, %s201
      %s203 = sphi 0, %s201
      %s204 = sphi 0, %s203
      %s218 = sphi 0, %s204
      %s224 = sphi 0, %s226
      %s227 = sphi 0, %s224
      %s228 = sphi 0, %s227
      %s244 = sphi 0, %s228
    $region4: #{tpu_custom_call.1} parent=1 // loop_header_branch
      %23 = sbr.rel (%p21) target = $region8
    $region5: #{tpu_custom_call.1} parent=1 // loop_body
      %s25 = ssub.s32 %s20, 1
      %s26 = ssub.s32 %s20, 2
      %s27 = sadd.s32 %s20, 1
      %s28 = ssub.s32 %s20, %s27
      %p29 = scmp.eq.s32.totalorder %s28, 0
      %s31 = sadd.s32 %s30, 1
      %s32 = scalar_select %p29, %s30, %s31
      %p35 = pneg %p29
      %p36 = scmp.eq.s32.totalorder %s20, 1
      %p37 = por %p35, %p36
      %p38 = scmp.ne.s32.totalorder %s30, %s33
      %p39 = scmp.eq.s32.totalorder %s20, 0
      %p40 = por %p38, %p39
      %p41 = scmp.ne.s32.totalorder %s30, %s33
      %p42 = scmp.eq.s32.totalorder %s25, 1
      %p43 = por %p41, %p42
      %p44 = scmp.ne.s32.totalorder %s33, %s34
      %p45 = scmp.eq.s32.totalorder %s25, 0
      %p46 = por %p44, %p45
      %p47 = scmp.ne.s32.totalorder %s33, %s34
      %p48 = scmp.eq.s32.totalorder %s26, 1
      %p49 = por %p47, %p48
      %p51 = scmp.ne.s32.totalorder %s34, %s50
      %p52 = scmp.eq.s32.totalorder %s26, 0
      %p53 = por %p51, %p52
      %s55 = sadd.s32 %s54, 1
      %p58 = scmp.eq.s32.totalorder %s20, 1
      %p59 = scmp.ne.s32.totalorder %s54, %s56
      %p60 = scmp.eq.s32.totalorder %s20, 0
      %p61 = por %p59, %p60
      %p62 = scmp.ne.s32.totalorder %s54, %s56
      %p63 = scmp.eq.s32.totalorder %s25, 1
      %p64 = por %p62, %p63
      %p65 = scmp.ne.s32.totalorder %s56, %s57
      %p66 = scmp.eq.s32.totalorder %s25, 0
      %p67 = por %p65, %p66
      %p68 = scmp.ne.s32.totalorder %s56, %s57
      %p69 = scmp.eq.s32.totalorder %s26, 1
      %p70 = por %p68, %p69
      %p72 = scmp.ne.s32.totalorder %s57, %s71
      %p73 = scmp.eq.s32.totalorder %s26, 0
      %p74 = por %p72, %p73
      %s76 = sadd.s32 %s75, 1
      %p79 = scmp.eq.s32.totalorder %s20, 1
      %p80 = scmp.ne.s32.totalorder %s75, %s77
      %p81 = scmp.eq.s32.totalorder %s20, 0
      %p82 = por %p80, %p81
      %p83 = scmp.ne.s32.totalorder %s75, %s77
      %p84 = scmp.eq.s32.totalorder %s25, 1
      %p85 = por %p83, %p84
      %p86 = scmp.ne.s32.totalorder %s77, %s78
      %p87 = scmp.eq.s32.totalorder %s25, 0
      %p88 = por %p86, %p87
      %p89 = scmp.ne.s32.totalorder %s77, %s78
      %p90 = scmp.eq.s32.totalorder %s26, 1
      %p91 = por %p89, %p90
      %p93 = scmp.ne.s32.totalorder %s78, %s92
      %p94 = scmp.eq.s32.totalorder %s26, 0
      %p95 = por %p93, %p94
      %s97 = sadd.s32 %s96, 1
      %p100 = scmp.eq.s32.totalorder %s20, 1
      %p101 = scmp.ne.s32.totalorder %s96, %s98
      %p102 = scmp.eq.s32.totalorder %s20, 0
      %p103 = por %p101, %p102
      %p104 = scmp.ne.s32.totalorder %s96, %s98
      %p105 = scmp.eq.s32.totalorder %s25, 1
      %p106 = por %p104, %p105
      %p107 = scmp.ne.s32.totalorder %s98, %s99
      %p108 = scmp.eq.s32.totalorder %s25, 0
      %p109 = por %p107, %p108
      %p110 = scmp.ne.s32.totalorder %s98, %s99
      %p111 = scmp.eq.s32.totalorder %s26, 1
      %p112 = por %p110, %p111
      %p114 = scmp.ne.s32.totalorder %s99, %s113
      %p115 = scmp.eq.s32.totalorder %s26, 0
      %p116 = por %p114, %p115
      %s118 = sadd.s32 %s117, 1
      %p121 = scmp.eq.s32.totalorder %s20, 1
      %p122 = scmp.ne.s32.totalorder %s117, %s119
      %p123 = scmp.eq.s32.totalorder %s20, 0
      %p124 = por %p122, %p123
      %p125 = scmp.ne.s32.totalorder %s117, %s119
      %p126 = scmp.eq.s32.totalorder %s25, 1
      %p127 = por %p125, %p126
      %p128 = scmp.ne.s32.totalorder %s119, %s120
      %p129 = scmp.eq.s32.totalorder %s25, 0
      %p130 = por %p128, %p129
      %p131 = scmp.ne.s32.totalorder %s119, %s120
      %p132 = scmp.eq.s32.totalorder %s26, 1
      %p133 = por %p131, %p132
      %p135 = scmp.ne.s32.totalorder %s120, %s134
      %p136 = scmp.eq.s32.totalorder %s26, 0
      %p137 = por %p135, %p136
      %s139 = sadd.s32 %s138, 1
      %p142 = scmp.eq.s32.totalorder %s20, 1
      %p143 = scmp.ne.s32.totalorder %s138, %s140
      %p144 = scmp.eq.s32.totalorder %s20, 0
      %p145 = por %p143, %p144
      %p146 = scmp.ne.s32.totalorder %s138, %s140
      %p147 = scmp.eq.s32.totalorder %s25, 1
      %p148 = por %p146, %p147
      %p149 = scmp.ne.s32.totalorder %s140, %s141
      %p150 = scmp.eq.s32.totalorder %s25, 0
      %p151 = por %p149, %p150
      %p152 = scmp.ne.s32.totalorder %s140, %s141
      %p153 = scmp.eq.s32.totalorder %s26, 1
      %p154 = por %p152, %p153
      %p156 = scmp.ne.s32.totalorder %s141, %s155
      %p157 = scmp.eq.s32.totalorder %s26, 0
      %p158 = por %p156, %p157
      %s160 = sadd.s32 %s159, 1
      %p163 = scmp.eq.s32.totalorder %s20, 1
      %p164 = scmp.ne.s32.totalorder %s159, %s161
      %p165 = scmp.eq.s32.totalorder %s20, 0
      %p166 = por %p164, %p165
      %p167 = scmp.ne.s32.totalorder %s159, %s161
      %p168 = scmp.eq.s32.totalorder %s25, 1
      %p169 = por %p167, %p168
      %p170 = scmp.ne.s32.totalorder %s161, %s162
      %p171 = scmp.eq.s32.totalorder %s25, 0
      %p172 = por %p170, %p171
      %p173 = scmp.ne.s32.totalorder %s161, %s162
      %p174 = scmp.eq.s32.totalorder %s26, 1
      %p175 = por %p173, %p174
      %p177 = scmp.ne.s32.totalorder %s162, %s176
      %p178 = scmp.eq.s32.totalorder %s26, 0
      %p179 = por %p177, %p178
      %s181 = sadd.s32 %s180, 1
      %p184 = scmp.eq.s32.totalorder %s20, 1
      %p185 = scmp.ne.s32.totalorder %s180, %s182
      %p186 = scmp.eq.s32.totalorder %s20, 0
      %p187 = por %p185, %p186
      %p188 = scmp.ne.s32.totalorder %s180, %s182
      %p189 = scmp.eq.s32.totalorder %s25, 1
      %p190 = por %p188, %p189
      %p191 = scmp.ne.s32.totalorder %s182, %s183
      %p192 = scmp.eq.s32.totalorder %s25, 0
      %p193 = por %p191, %p192
      %p194 = scmp.ne.s32.totalorder %s182, %s183
      %p195 = scmp.eq.s32.totalorder %s26, 1
      %p196 = por %p194, %p195
      %p198 = scmp.ne.s32.totalorder %s183, %s197
      %p199 = scmp.eq.s32.totalorder %s26, 0
      %p200 = por %p198, %p199
      %s202 = sadd.s32 %s201, 1
      %p205 = scmp.eq.s32.totalorder %s20, 1
      %p206 = scmp.ne.s32.totalorder %s201, %s203
      %p207 = scmp.eq.s32.totalorder %s20, 0
      %p208 = por %p206, %p207
      %p209 = scmp.ne.s32.totalorder %s201, %s203
      %p210 = scmp.eq.s32.totalorder %s25, 1
      %p211 = por %p209, %p210
      %p212 = scmp.ne.s32.totalorder %s203, %s204
      %p213 = scmp.eq.s32.totalorder %s25, 0
      %p214 = por %p212, %p213
      %p215 = scmp.ne.s32.totalorder %s203, %s204
      %p216 = scmp.eq.s32.totalorder %s26, 1
      %p217 = por %p215, %p216
      %p219 = scmp.ne.s32.totalorder %s204, %s218
      %p220 = scmp.eq.s32.totalorder %s26, 0
      %p221 = por %p219, %p220
      %s222 = ssub.s32 %s20, %s27
      %p223 = scmp.eq.s32.totalorder %s222, 0
      %s225 = sadd.s32 %s224, 1
      %s226 = scalar_select %p223, %s224, %s225
      %p229 = pneg %p223
      %p230 = scmp.eq.s32.totalorder %s20, 1
      %p231 = por %p229, %p230
      %p232 = scmp.ne.s32.totalorder %s224, %s227
      %p233 = scmp.eq.s32.totalorder %s20, 0
      %p234 = por %p232, %p233
      %p235 = scmp.ne.s32.totalorder %s224, %s227
      %p236 = scmp.eq.s32.totalorder %s25, 1
      %p237 = por %p235, %p236
      %p238 = scmp.ne.s32.totalorder %s227, %s228
      %p239 = scmp.eq.s32.totalorder %s25, 0
      %p240 = por %p238, %p239
      %p241 = scmp.ne.s32.totalorder %s227, %s228
      %p242 = scmp.eq.s32.totalorder %s26, 1
      %p243 = por %p241, %p242
      %p245 = scmp.ne.s32.totalorder %s228, %s244
      %p246 = scmp.eq.s32.totalorder %s26, 0
      %p247 = por %p245, %p246
      %p248 = scmp.le.s32.totalorder 1, %s20
      %p249 = scmp.lt.s32.totalorder %s20, 3
      %p250 = pnand %p248, %p249
      %p251 = pneg %p250
      // Predicated region
      $region9: #{tpu_custom_call.1} parent=5 // pred_check
        _
      $region10: #{tpu_custom_call.1} parent=5 // pred_check_branch
        %253 = sbr.rel (%p250) target = $region12
      $region11: #{tpu_custom_call.1} parent=5 // pred_region
        %s254 = ssub.s32 %s20, 1
        // Predicated region
        $region13: #{tpu_custom_call.1} parent=11 // pred_check
          %p255 = pneg %p67
        $region14: #{tpu_custom_call.1} parent=11 // pred_check_branch
          %257 = sbr.rel (%p255) target = $region16
        $region15: #{tpu_custom_call.1} parent=11 // pred_region
          _
        $region16: #{tpu_custom_call.1} parent=11 // pred_fallthru
          _
        // Predicated region
        $region17: #{tpu_custom_call.1} parent=11 // pred_check
          %p258 = pneg %p88
        $region18: #{tpu_custom_call.1} parent=11 // pred_check_branch
          %260 = sbr.rel (%p258) target = $region20
        $region19: #{tpu_custom_call.1} parent=11 // pred_region
          _
        $region20: #{tpu_custom_call.1} parent=11 // pred_fallthru
          _
        // Predicated region
        $region21: #{tpu_custom_call.1} parent=11 // pred_check
          %p261 = pneg %p109
        $region22: #{tpu_custom_call.1} parent=11 // pred_check_branch
          %263 = sbr.rel (%p261) target = $region24
        $region23: #{tpu_custom_call.1} parent=11 // pred_region
          _
        $region24: #{tpu_custom_call.1} parent=11 // pred_fallthru
          _
        // Predicated region
        $region25: #{tpu_custom_call.1} parent=11 // pred_check
          %p264 = pneg %p130
        $region26: #{tpu_custom_call.1} parent=11 // pred_check_branch
          %266 = sbr.rel (%p264) target = $region28
        $region27: #{tpu_custom_call.1} parent=11 // pred_region
          _
        $region28: #{tpu_custom_call.1} parent=11 // pred_fallthru
          _
        // Predicated region
        $region29: #{tpu_custom_call.1} parent=11 // pred_check
          %p267 = pneg %p151
        $region30: #{tpu_custom_call.1} parent=11 // pred_check_branch
          %269 = sbr.rel (%p267) target = $region32
        $region31: #{tpu_custom_call.1} parent=11 // pred_region
          _
        $region32: #{tpu_custom_call.1} parent=11 // pred_fallthru
          _
        // Predicated region
        $region33: #{tpu_custom_call.1} parent=11 // pred_check
          %p270 = pneg %p172
        $region34: #{tpu_custom_call.1} parent=11 // pred_check_branch
          %272 = sbr.rel (%p270) target = $region36
        $region35: #{tpu_custom_call.1} parent=11 // pred_region
          _
        $region36: #{tpu_custom_call.1} parent=11 // pred_fallthru
          _
        // Predicated region
        $region37: #{tpu_custom_call.1} parent=11 // pred_check
          %p273 = pneg %p193
        $region38: #{tpu_custom_call.1} parent=11 // pred_check_branch
          %275 = sbr.rel (%p273) target = $region40
        $region39: #{tpu_custom_call.1} parent=11 // pred_region
          _
        $region40: #{tpu_custom_call.1} parent=11 // pred_fallthru
          _
        // Predicated region
        $region41: #{tpu_custom_call.1} parent=11 // pred_check
          %p276 = pneg %p214
        $region42: #{tpu_custom_call.1} parent=11 // pred_check_branch
          %278 = sbr.rel (%p276) target = $region44
        $region43: #{tpu_custom_call.1} parent=11 // pred_region
          _
        $region44: #{tpu_custom_call.1} parent=11 // pred_fallthru
          _
      $region12: #{tpu_custom_call.1} parent=5 // pred_fallthru
        _
      %p279 = scmp.lt.s32.totalorder %s20, 2
      // Predicated region
      $region45: #{tpu_custom_call.1} parent=5 // pred_check
        %p280 = pneg %p279
      $region46: #{tpu_custom_call.1} parent=5 // pred_check_branch
        %282 = sbr.rel (%p280) target = $region48
      $region47: #{tpu_custom_call.1} parent=5 // pred_region
        // Predicated region
        $region49: #{tpu_custom_call.1} parent=47 // pred_check
          %p283 = pneg %p40
        $region50: #{tpu_custom_call.1} parent=47 // pred_check_branch
          %285 = sbr.rel (%p283) target = $region52
        $region51: #{tpu_custom_call.1} parent=47 // pred_region
          %s286 = smul.u32 2, %s20
          %p287 = scmp.lt.s32.totalorder %s286, 3
          %s288 = scalar_select %p287, %s286, 3
          %s289 = scalar_lea.vmem %s0, %s288
          %s290 = smul.u32 2, %s20
        $region52: #{tpu_custom_call.1} parent=47 // pred_fallthru
          _
      $region48: #{tpu_custom_call.1} parent=5 // pred_fallthru
        _
      %p291 = scmp.le.s32.totalorder 1, %s20
      %p292 = scmp.lt.s32.totalorder %s20, 3
      %p293 = pnand %p291, %p292
      %p294 = pneg %p293
      // Predicated region
      $region53: #{tpu_custom_call.1} parent=5 // pred_check
        _
      $region54: #{tpu_custom_call.1} parent=5 // pred_check_branch
        %296 = sbr.rel (%p293) target = $region56
      $region55: #{tpu_custom_call.1} parent=5 // pred_region
        %s297 = ssub.s32 %s20, 1
        %s298 = smul.u32 2, %s25
        %p299 = scmp.lt.s32.totalorder %s298, 3
        %s300 = scalar_select %p299, %s298, 3
        %s301 = scalar_lea.vmem %s0, %s300
        %p302 = pneg %p46
        %p303 = pneg %p43
        %p304 = pneg %p67
        %p305 = pneg %p64
        %p306 = pneg %p88
        %p307 = pneg %p85
        %p308 = pneg %p109
        %p309 = pneg %p106
        %p310 = pneg %p130
        %p311 = pneg %p127
        %p312 = pneg %p151
        %p313 = pneg %p148
        %p314 = pneg %p172
        %p315 = pneg %p169
        %p316 = pneg %p193
        %p317 = pneg %p190
        %p318 = pneg %p214
        %p319 = pneg %p211
        %p320 = pneg %p240
        %p321 = pneg %p237
        %s322 = sand.u32 %s227, 1
        %s323 = scalar_lea.sflag [#allocation4], %s322
        %s324 = sand.u32 %s227, 1
        %s325 = smul.addr %s324, 2
        %s326 = scalar_lea.vmem [#allocation3], %s325
        %s327 = smul.u32 2, %s25
        %p328 = scmp.lt.s32.totalorder %s327, 3
        %s329 = scalar_select %p328, %s327, 3
        %s330 = scalar_lea.vmem %s0, %s329
        %s331 = smul.u32 2, %s25
        %s332 = smul.u32 2, %s25
        %v334 = vld [vmem:[%s330] sm:$0x3]
        %v335 = vld [vmem:[%s1] sm:$0xf]
        %v336 = vld [vmem:[%s1 + $0x4] sm:$0xf]
        %v337 = vld [vmem:[%s1 + $0x8] sm:$0xf]
        %v338 = vld [vmem:[%s1 + $0xc] sm:$0xf]
        %v343 = vunpack.c.l.b16 %v335
        %v344 = vunpack.c.l.b16 %v336
        %v345 = vunpack.c.l.b16 %v337
        %v346 = vunpack.c.l.b16 %v338
        %v347 = vpack.c.b16 %v344, %v343
        %v348 = vpack.c.b16 %v346, %v345
        %v351 = vunpack.c.l.s4 1966171168
        %v352 = vunpack.c.0.s8 %v351
        %v353 = vlaneseq
        %v354 = vshrl.u32 %v353, 7
        %v355 = vsub.s32 %v352, %v354
        %v356 = vrot.slane %v334, %v355
        %v357 = vcombine.high %v356, %v356
        %v359 = vunpack.c.l.s4 1966171168
        %v360 = vunpack.c.0.s8 %v359
        %v361 = vlaneseq
        %v362 = vshrl.u32 %v361, 7
        %v363 = vsub.s32 %v360, %v362
        %v364 = vrot.slane %v356, %v363
        %v366 = vunpack.c.l.s4 1966171168
        %v367 = vunpack.c.0.s8 %v366
        %v368 = vlaneseq
        %v369 = vshrl.u32 %v368, 7
        %v370 = vsub.s32 %v367, %v369
        %v371 = vrot.slane %v357, %v370
        %vm372 = vcmask 15360
        %v374 = vsel %vm372, %v347, 0
        %v377 = vsel %vm372, %v348, 0
        %vm379 = vcmask 1040384
        %v381 = vsel %vm379, %v364, 0
        %v384 = vsel %vm379, %v371, 0
        %386 = vmatprep.subr.bf16.mxu0 0
        %387 = vmatpush1.bf16.msra.mxu0 0
        %388 = vmatprep.subr.bf16.mxu0 0
        %389 = vmatpush1.bf16.msra.mxu0 0
        %390 = vmatprep.subr.bf16.mxu0 0
        %391 = vmatpush1.bf16.msra.mxu0 0
        %392 = vmatprep.subr.bf16.mxu0 0
        %393 = vmatpush1.bf16.msra.mxu0 0
        %394 = vmatprep.subr.bf16.mxu0 0
        %395 = vmatpush1.bf16.msra.mxu0 0
        %396 = vmatprep.subr.bf16.mxu0 0
        %397 = vmatpush1.bf16.msra.mxu0 0
        %398 = vmatprep.subr.bf16.mxu0 0
        %399 = vmatpush1.bf16.msra.mxu0 0
        %400 = vmatprep.subr.bf16.mxu0 %v384
        %401 = vmatpush1.bf16.msra.mxu0 %v381
        %402 = vmatprep.subr.bf16.mxu0 0
        %403 = vmatpush2.bf16.msra.mxu0 0
        %404 = vmatprep.subr.bf16.mxu0 0
        %405 = vmatpush2.bf16.msra.mxu0 0
        %406 = vmatprep.subr.bf16.mxu0 0
        %407 = vmatpush2.bf16.msra.mxu0 0
        %408 = vmatprep.subr.bf16.mxu0 0
        %409 = vmatpush2.bf16.msra.mxu0 0
        %410 = vmatprep.subr.bf16.mxu0 0
        %411 = vmatpush2.bf16.msra.mxu0 0
        %412 = vmatprep.subr.bf16.mxu0 0
        %413 = vmatpush2.bf16.msra.mxu0 0
        %414 = vmatprep.subr.bf16.mxu0 0
        %415 = vmatpush2.bf16.msra.mxu0 0
        %416 = vmatprep.subr.bf16.mxu0 0
        %417 = vmatpush2.bf16.msra.mxu0 0
        %418 = vmatprep.mubr.bf16.mxu0 0
        %419 = vmatmul.mubr.bf16.gmra.mxu0 %v374
        %v420 = vpop.f32.mrf.mxu0
        %v421 = vadd.f32 0.0, %v420
        %v422 = vpop.f32.mrf.mxu0
        %v423 = vadd.f32 0.0, %v422
        %v424 = vpop.f32.mrf.mxu0
        %v425 = vadd.f32 0.0, %v424
        %v426 = vpop.f32.mrf.mxu0
        %v427 = vadd.f32 0.0, %v426
        %428 = vmatprep.mubr.bf16.mxu0 0
        %429 = vmatmul.mubr.bf16.gmra.mxu0 %v377
        %v430 = vpop.f32.mrf.mxu0
        %v431 = vadd.f32 0.0, %v430
        %v432 = vpop.f32.mrf.mxu0
        %v433 = vadd.f32 0.0, %v432
        %v434 = vpop.f32.mrf.mxu0
        %v435 = vadd.f32 0.0, %v434
        %v436 = vpop.f32.mrf.mxu0
        %v437 = vadd.f32 0.0, %v436
        %438 = vdwg.mxu0
        %v439 = vpack.c.bf16 %v425, %v421
        %v440 = vpack.c.bf16 %v427, %v423
        %v441 = vpack.c.bf16 %v435, %v431
        %v442 = vpack.c.bf16 %v437, %v433
        %v443 = vld [vmem:[%s2] sm:$0xf]
        %v444 = vld [vmem:[%s2 + $0x4] sm:$0xf]
        %v445 = vld [vmem:[%s2 + $0x8] sm:$0xf]
        %v446 = vld [vmem:[%s2 + $0xc] sm:$0xf]
        %448 = vset.pattern.permute.xlu0 0
        %449 = vperm.xlu0 %448, %v443
        %v450 = vpop.permute.xlu0 %449
        %v453 = vunpack.c.l.s4 839922192
        %v454 = vunpack.c.0.s8 %v453
        %v455 = vlaneseq
        %v456 = vshrl.u32 %v455, 7
        %v457 = vsub.s32 %v454, %v456
        %v458 = vrot.slane %v450, %v457
        %460 = vset.pattern.permute.xlu0 0
        %461 = vperm.xlu0 %460, %v444
        %v462 = vpop.permute.xlu0 %461
        %v465 = vunpack.c.l.s4 839922192
        %v466 = vunpack.c.0.s8 %v465
        %v467 = vlaneseq
        %v468 = vshrl.u32 %v467, 7
        %v469 = vsub.s32 %v466, %v468
        %v470 = vrot.slane %v462, %v469
        %472 = vset.pattern.permute.xlu0 0
        %473 = vperm.xlu0 %472, %v445
        %v474 = vpop.permute.xlu0 %473
        %v477 = vunpack.c.l.s4 839922192
        %v478 = vunpack.c.0.s8 %v477
        %v479 = vlaneseq
        %v480 = vshrl.u32 %v479, 7
        %v481 = vsub.s32 %v478, %v480
        %v482 = vrot.slane %v474, %v481
        %484 = vset.pattern.permute.xlu0 0
        %485 = vperm.xlu0 %484, %v446
        %v486 = vpop.permute.xlu0 %485
        %v489 = vunpack.c.l.s4 839922192
        %v490 = vunpack.c.0.s8 %v489
        %v491 = vlaneseq
        %v492 = vshrl.u32 %v491, 7
        %v493 = vsub.s32 %v490, %v492
        %v494 = vrot.slane %v486, %v493
        %v499 = vunpack.c.l.b16 %v458
        %v500 = vunpack.c.l.b16 %v470
        %v501 = vunpack.c.l.b16 %v482
        %v502 = vunpack.c.l.b16 %v494
        %v503 = vpack.c.b16 %v500, %v499
        %v504 = vpack.c.b16 %v502, %v501
        %v507 = vadd.bf16 %v439, %v503
        %v508 = vadd.bf16 %v440, %v503
        %v509 = vadd.bf16 %v441, %v504
        %v510 = vadd.bf16 %v442, %v504
        %v511 = vtanh.bf16.pop %v507
        %v512 = vtanh.bf16.pop %v508
        %v513 = vtanh.bf16.pop %v509
        %v514 = vtanh.bf16.pop %v510
        %v515 = vld [vmem:[%s3] sm:$0xf]
        %v516 = vld [vmem:[%s3 + $0x4] sm:$0xf]
        %v517 = vld [vmem:[%s3 + $0x8] sm:$0xf]
        %v518 = vld [vmem:[%s3 + $0xc] sm:$0xf]
        %v523 = vunpack.c.l.b16 %v515
        %v524 = vunpack.c.l.b16 %v516
        %v525 = vunpack.c.l.b16 %v517
        %v526 = vunpack.c.l.b16 %v518
        %v527 = vpack.c.b16 %v524, %v523
        %v528 = vpack.c.b16 %v526, %v525
        %vm529 = vcmask 261120
        %v531 = vsel %vm529, %v527, 0
        %v534 = vsel %vm529, %v528, 0
        %536 = vmatprep.subr.bf16.mxu0 0
        %537 = vmatpush1.bf16.msra.mxu0 0
        %538 = vmatprep.subr.bf16.mxu0 0
        %539 = vmatpush1.bf16.msra.mxu0 0
        %540 = vmatprep.subr.bf16.mxu0 0
        %541 = vmatpush1.bf16.msra.mxu0 0
        %542 = vmatprep.subr.bf16.mxu0 0
        %543 = vmatpush1.bf16.msra.mxu0 0
        %544 = vmatprep.subr.bf16.mxu0 0
        %545 = vmatpush1.bf16.msra.mxu0 0
        %546 = vmatprep.subr.bf16.mxu0 0
        %547 = vmatpush1.bf16.msra.mxu0 0
        %548 = vmatprep.subr.bf16.mxu0 %v514
        %549 = vmatpush1.bf16.msra.mxu0 %v513
        %550 = vmatprep.subr.bf16.mxu0 %v512
        %551 = vmatpush1.bf16.msra.mxu0 %v511
        %552 = vmatprep.subr.bf16.mxu0 0
        %553 = vmatpush2.bf16.msra.mxu0 0
        %554 = vmatprep.subr.bf16.mxu0 0
        %555 = vmatpush2.bf16.msra.mxu0 0
        %556 = vmatprep.subr.bf16.mxu0 0
        %557 = vmatpush2.bf16.msra.mxu0 0
        %558 = vmatprep.subr.bf16.mxu0 0
        %559 = vmatpush2.bf16.msra.mxu0 0
        %560 = vmatprep.subr.bf16.mxu0 0
        %561 = vmatpush2.bf16.msra.mxu0 0
        %562 = vmatprep.subr.bf16.mxu0 0
        %563 = vmatpush2.bf16.msra.mxu0 0
        %564 = vmatprep.subr.bf16.mxu0 0
        %565 = vmatpush2.bf16.msra.mxu0 0
        %566 = vmatprep.subr.bf16.mxu0 0
        %567 = vmatpush2.bf16.msra.mxu0 0
        %568 = vmatprep.mubr.bf16.mxu0 0
        %569 = vmatmul.mubr.bf16.gmra.mxu0 %v531
        %v570 = vpop.f32.mrf.mxu0
        %v571 = vadd.f32 0.0, %v570
        %v572 = vpop.f32.mrf.mxu0
        %v573 = vadd.f32 0.0, %v572
        %v574 = vpop.f32.mrf.mxu0
        %v575 = vadd.f32 0.0, %v574
        %v576 = vpop.f32.mrf.mxu0
        %v577 = vadd.f32 0.0, %v576
        %578 = vmatprep.mubr.bf16.mxu0 0
        %579 = vmatmul.mubr.bf16.gmra.mxu0 %v534
        %v580 = vpop.f32.mrf.mxu0
        %v581 = vadd.f32 0.0, %v580
        %v582 = vpop.f32.mrf.mxu0
        %v583 = vadd.f32 0.0, %v582
        %v584 = vpop.f32.mrf.mxu0
        %v585 = vadd.f32 0.0, %v584
        %v586 = vpop.f32.mrf.mxu0
        %v587 = vadd.f32 0.0, %v586
        %588 = vdwg.mxu0
        %v589 = vpack.c.bf16 %v575, %v571
        %v590 = vpack.c.bf16 %v577, %v573
        %v591 = vpack.c.bf16 %v585, %v581
        %v592 = vpack.c.bf16 %v587, %v583
        %v593 = vld [vmem:[%s4] sm:$0xf]
        %v594 = vld [vmem:[%s4 + $0x4] sm:$0xf]
        %v595 = vld [vmem:[%s4 + $0x8] sm:$0xf]
        %v596 = vld [vmem:[%s4 + $0xc] sm:$0xf]
        %598 = vset.pattern.permute.xlu0 0
        %599 = vperm.xlu0 %598, %v593
        %v600 = vpop.permute.xlu0 %599
        %v603 = vunpack.c.l.s4 839922192
        %v604 = vunpack.c.0.s8 %v603
        %v605 = vlaneseq
        %v606 = vshrl.u32 %v605, 7
        %v607 = vsub.s32 %v604, %v606
        %v608 = vrot.slane %v600, %v607
        %610 = vset.pattern.permute.xlu0 0
        %611 = vperm.xlu0 %610, %v594
        %v612 = vpop.permute.xlu0 %611
        %v615 = vunpack.c.l.s4 839922192
        %v616 = vunpack.c.0.s8 %v615
        %v617 = vlaneseq
        %v618 = vshrl.u32 %v617, 7
        %v619 = vsub.s32 %v616, %v618
        %v620 = vrot.slane %v612, %v619
        %622 = vset.pattern.permute.xlu0 0
        %623 = vperm.xlu0 %622, %v595
        %v624 = vpop.permute.xlu0 %623
        %v627 = vunpack.c.l.s4 839922192
        %v628 = vunpack.c.0.s8 %v627
        %v629 = vlaneseq
        %v630 = vshrl.u32 %v629, 7
        %v631 = vsub.s32 %v628, %v630
        %v632 = vrot.slane %v624, %v631
        %634 = vset.pattern.permute.xlu0 0
        %635 = vperm.xlu0 %634, %v596
        %v636 = vpop.permute.xlu0 %635
        %v639 = vunpack.c.l.s4 839922192
        %v640 = vunpack.c.0.s8 %v639
        %v641 = vlaneseq
        %v642 = vshrl.u32 %v641, 7
        %v643 = vsub.s32 %v640, %v642
        %v644 = vrot.slane %v636, %v643
        %v649 = vunpack.c.l.b16 %v608
        %v650 = vunpack.c.l.b16 %v620
        %v651 = vunpack.c.l.b16 %v632
        %v652 = vunpack.c.l.b16 %v644
        %v653 = vpack.c.b16 %v650, %v649
        %v654 = vpack.c.b16 %v652, %v651
        %v657 = vadd.bf16 %v589, %v653
        %v658 = vadd.bf16 %v590, %v653
        %v659 = vadd.bf16 %v591, %v654
        %v660 = vadd.bf16 %v592, %v654
        %v661 = vtanh.bf16.pop %v657
        %v662 = vtanh.bf16.pop %v658
        %v663 = vtanh.bf16.pop %v659
        %v664 = vtanh.bf16.pop %v660
        %v665 = vld [vmem:[%s5] sm:$0xf]
        %v666 = vld [vmem:[%s5 + $0x4] sm:$0xf]
        %v667 = vld [vmem:[%s5 + $0x8] sm:$0xf]
        %v668 = vld [vmem:[%s5 + $0xc] sm:$0xf]
        %v673 = vunpack.c.l.b16 %v665
        %v674 = vunpack.c.l.b16 %v666
        %v675 = vunpack.c.l.b16 %v667
        %v676 = vunpack.c.l.b16 %v668
        %v677 = vpack.c.b16 %v674, %v673
        %v678 = vpack.c.b16 %v676, %v675
        %v680 = vsel %vm529, %v677, 0
        %v683 = vsel %vm529, %v678, 0
        %685 = vmatprep.subr.bf16.mxu0 0
        %686 = vmatpush1.bf16.msra.mxu0 0
        %687 = vmatprep.subr.bf16.mxu0 0
        %688 = vmatpush1.bf16.msra.mxu0 0
        %689 = vmatprep.subr.bf16.mxu0 0
        %690 = vmatpush1.bf16.msra.mxu0 0
        %691 = vmatprep.subr.bf16.mxu0 0
        %692 = vmatpush1.bf16.msra.mxu0 0
        %693 = vmatprep.subr.bf16.mxu0 0
        %694 = vmatpush1.bf16.msra.mxu0 0
        %695 = vmatprep.subr.bf16.mxu0 0
        %696 = vmatpush1.bf16.msra.mxu0 0
        %697 = vmatprep.subr.bf16.mxu0 %v664
        %698 = vmatpush1.bf16.msra.mxu0 %v663
        %699 = vmatprep.subr.bf16.mxu0 %v662
        %700 = vmatpush1.bf16.msra.mxu0 %v661
        %701 = vmatprep.subr.bf16.mxu0 0
        %702 = vmatpush2.bf16.msra.mxu0 0
        %703 = vmatprep.subr.bf16.mxu0 0
        %704 = vmatpush2.bf16.msra.mxu0 0
        %705 = vmatprep.subr.bf16.mxu0 0
        %706 = vmatpush2.bf16.msra.mxu0 0
        %707 = vmatprep.subr.bf16.mxu0 0
        %708 = vmatpush2.bf16.msra.mxu0 0
        %709 = vmatprep.subr.bf16.mxu0 0
        %710 = vmatpush2.bf16.msra.mxu0 0
        %711 = vmatprep.subr.bf16.mxu0 0
        %712 = vmatpush2.bf16.msra.mxu0 0
        %713 = vmatprep.subr.bf16.mxu0 0
        %714 = vmatpush2.bf16.msra.mxu0 0
        %715 = vmatprep.subr.bf16.mxu0 0
        %716 = vmatpush2.bf16.msra.mxu0 0
        %717 = vmatprep.mubr.bf16.mxu0 0
        %718 = vmatmul.mubr.bf16.gmra.mxu0 %v680
        %v719 = vpop.f32.mrf.mxu0
        %v720 = vadd.f32 0.0, %v719
        %v721 = vpop.f32.mrf.mxu0
        %v722 = vadd.f32 0.0, %v721
        %v723 = vpop.f32.mrf.mxu0
        %v724 = vadd.f32 0.0, %v723
        %v725 = vpop.f32.mrf.mxu0
        %v726 = vadd.f32 0.0, %v725
        %727 = vmatprep.mubr.bf16.mxu0 0
        %728 = vmatmul.mubr.bf16.gmra.mxu0 %v683
        %v729 = vpop.f32.mrf.mxu0
        %v730 = vadd.f32 0.0, %v729
        %v731 = vpop.f32.mrf.mxu0
        %v732 = vadd.f32 0.0, %v731
        %v733 = vpop.f32.mrf.mxu0
        %v734 = vadd.f32 0.0, %v733
        %v735 = vpop.f32.mrf.mxu0
        %v736 = vadd.f32 0.0, %v735
        %737 = vdwg.mxu0
        %v738 = vpack.c.bf16 %v724, %v720
        %v739 = vpack.c.bf16 %v726, %v722
        %v740 = vpack.c.bf16 %v734, %v730
        %v741 = vpack.c.bf16 %v736, %v732
        %v742 = vld [vmem:[%s6] sm:$0xf]
        %v743 = vld [vmem:[%s6 + $0x4] sm:$0xf]
        %v744 = vld [vmem:[%s6 + $0x8] sm:$0xf]
        %v745 = vld [vmem:[%s6 + $0xc] sm:$0xf]
        %747 = vset.pattern.permute.xlu0 0
        %748 = vperm.xlu0 %747, %v742
        %v749 = vpop.permute.xlu0 %748
        %v752 = vunpack.c.l.s4 839922192
        %v753 = vunpack.c.0.s8 %v752
        %v754 = vlaneseq
        %v755 = vshrl.u32 %v754, 7
        %v756 = vsub.s32 %v753, %v755
        %v757 = vrot.slane %v749, %v756
        %759 = vset.pattern.permute.xlu0 0
        %760 = vperm.xlu0 %759, %v743
        %v761 = vpop.permute.xlu0 %760
        %v764 = vunpack.c.l.s4 839922192
        %v765 = vunpack.c.0.s8 %v764
        %v766 = vlaneseq
        %v767 = vshrl.u32 %v766, 7
        %v768 = vsub.s32 %v765, %v767
        %v769 = vrot.slane %v761, %v768
        %771 = vset.pattern.permute.xlu0 0
        %772 = vperm.xlu0 %771, %v744
        %v773 = vpop.permute.xlu0 %772
        %v776 = vunpack.c.l.s4 839922192
        %v777 = vunpack.c.0.s8 %v776
        %v778 = vlaneseq
        %v779 = vshrl.u32 %v778, 7
        %v780 = vsub.s32 %v777, %v779
        %v781 = vrot.slane %v773, %v780
        %783 = vset.pattern.permute.xlu0 0
        %784 = vperm.xlu0 %783, %v745
        %v785 = vpop.permute.xlu0 %784
        %v788 = vunpack.c.l.s4 839922192
        %v789 = vunpack.c.0.s8 %v788
        %v790 = vlaneseq
        %v791 = vshrl.u32 %v790, 7
        %v792 = vsub.s32 %v789, %v791
        %v793 = vrot.slane %v785, %v792
        %v798 = vunpack.c.l.b16 %v757
        %v799 = vunpack.c.l.b16 %v769
        %v800 = vunpack.c.l.b16 %v781
        %v801 = vunpack.c.l.b16 %v793
        %v802 = vpack.c.b16 %v799, %v798
        %v803 = vpack.c.b16 %v801, %v800
        %v806 = vadd.bf16 %v738, %v802
        %v807 = vadd.bf16 %v739, %v802
        %v808 = vadd.bf16 %v740, %v803
        %v809 = vadd.bf16 %v741, %v803
        %v810 = vtanh.bf16.pop %v806
        %v811 = vtanh.bf16.pop %v807
        %v812 = vtanh.bf16.pop %v808
        %v813 = vtanh.bf16.pop %v809
        %v814 = vld [vmem:[%s7] sm:$0x1]
        %v815 = vld [vmem:[#allocation2] sm:$0x1]
        %817 = vset.pattern.permute.xlu0 0
        %818 = vperm.xlu0 %817, %v815
        %v819 = vpop.permute.xlu0 %818
        %v821 = vlaneseq
        %v822 = vshrl.u32 %v821, 7
        %v823 = vsub.s32 0, %v822
        %v824 = vrot.slane %v819, %v823
        %v826 = vsel %vm529, %v814, 0
        %828 = vmatprep.subr.bf16.mxu0 0
        %829 = vmatpush1.bf16.msra.mxu0 0
        %830 = vmatprep.subr.bf16.mxu0 0
        %831 = vmatpush1.bf16.msra.mxu0 0
        %832 = vmatprep.subr.bf16.mxu0 0
        %833 = vmatpush1.bf16.msra.mxu0 0
        %834 = vmatprep.subr.bf16.mxu0 0
        %835 = vmatpush1.bf16.msra.mxu0 0
        %836 = vmatprep.subr.bf16.mxu0 0
        %837 = vmatpush1.bf16.msra.mxu0 0
        %838 = vmatprep.subr.bf16.mxu0 0
        %839 = vmatpush1.bf16.msra.mxu0 0
        %840 = vmatprep.subr.bf16.mxu0 %v813
        %841 = vmatpush1.bf16.msra.mxu0 %v812
        %842 = vmatprep.subr.bf16.mxu0 %v811
        %843 = vmatpush1.bf16.msra.mxu0 %v810
        %844 = vmatprep.subr.bf16.mxu0 0
        %845 = vmatpush2.bf16.msra.mxu0 0
        %846 = vmatprep.subr.bf16.mxu0 0
        %847 = vmatpush2.bf16.msra.mxu0 0
        %848 = vmatprep.subr.bf16.mxu0 0
        %849 = vmatpush2.bf16.msra.mxu0 0
        %850 = vmatprep.subr.bf16.mxu0 0
        %851 = vmatpush2.bf16.msra.mxu0 0
        %852 = vmatprep.subr.bf16.mxu0 0
        %853 = vmatpush2.bf16.msra.mxu0 0
        %854 = vmatprep.subr.bf16.mxu0 0
        %855 = vmatpush2.bf16.msra.mxu0 0
        %856 = vmatprep.subr.bf16.mxu0 0
        %857 = vmatpush2.bf16.msra.mxu0 0
        %858 = vmatprep.subr.bf16.mxu0 0
        %859 = vmatpush2.bf16.msra.mxu0 0
        %860 = vmatprep.mubr.bf16.mxu0 0
        %861 = vmatmul.mubr.bf16.gmra.mxu0 %v826
        %v862 = vpop.f32.mrf.mxu0
        %v863 = vadd.f32 %v824, %v862
        %v864 = vpop.f32.mrf.mxu0
        %v865 = vadd.f32 %v824, %v864
        %v866 = vpop.f32.mrf.mxu0
        %v867 = vpop.f32.mrf.mxu0
        %868 = vdwg.mxu0
        %v871 = vcombine.low %v863, %v865
        %v873 = vunpack.c.l.s4 1966171168
        %v874 = vunpack.c.0.s8 %v873
        %v875 = vlaneseq
        %v876 = vshrl.u32 %v875, 7
        %v877 = vsub.s32 %v874, %v876
        %v878 = vrot.slane %v871, %v877
        %v880 = vunpack.c.l.s4 1966171168
        %v881 = vunpack.c.0.s8 %v880
        %v882 = vlaneseq
        %v883 = vshrl.u32 %v882, 7
        %v884 = vsub.s32 %v881, %v883
        %v885 = vrot.slane %v878, %v884
        %v887 = vlaneseq
        %vm888 = vcmp.ge.s32.totalorder %v887, 0
        %vm889 = vcmp.lt.s32.totalorder %v887, 256
        %vm890 = vmand %vm888, %vm889
        %891 = vst.msk [vmem:[%s326] sm:$0x3] %vm890, %v885
        %s892 = sand.u32 %s227, 1
        %s893 = scalar_lea.sflag [#allocation4], %s892
        %s894 = sand.u32 %s227, 1
        %s895 = smul.addr %s894, 2
        %s896 = scalar_lea.vmem [#allocation3], %s895
        // Predicated region
        $region57: #{tpu_custom_call.1} parent=55 // pred_check
          %p897 = pneg %p237
        $region58: #{tpu_custom_call.1} parent=55 // pred_check_branch
          %899 = sbr.rel (%p897) target = $region60
        $region59: #{tpu_custom_call.1} parent=55 // pred_region
          %s900 = smul.u32 2, %s25
          %s902 = ssub.s32 32, 32
          %903 = vsyncadd %s893, %s902
          %s904 = smul.addr %s900, 16
          %s905 = scalar_lea.hbm %s9, %s904
          %s907 = sshll.u32 %s896, 4
          %s908 = int_to_ptr.vmem [resolvable:$true] %s907
          %910 = dma.vmem_to_hbm [thread:$0]  %s908, 32, %s905, %s893
        $region60: #{tpu_custom_call.1} parent=55 // pred_fallthru
          _
      $region56: #{tpu_custom_call.1} parent=5 // pred_fallthru
        _
      %p911 = scmp.le.s32.totalorder 2, %s20
      // Predicated region
      $region61: #{tpu_custom_call.1} parent=5 // pred_check
        %p912 = pneg %p911
      $region62: #{tpu_custom_call.1} parent=5 // pred_check_branch
        %914 = sbr.rel (%p912) target = $region64
      $region63: #{tpu_custom_call.1} parent=5 // pred_region
        %s915 = ssub.s32 %s20, 2
        // Predicated region
        $region65: #{tpu_custom_call.1} parent=63 // pred_check
          %p916 = pneg %p243
        $region66: #{tpu_custom_call.1} parent=63 // pred_check_branch
          %918 = sbr.rel (%p916) target = $region68
        $region67: #{tpu_custom_call.1} parent=63 // pred_region
          %s919 = sand.u32 %s228, 1
          %s920 = scalar_lea.sflag [#allocation4], %s919
          %s921 = sand.u32 %s228, 1
          %s922 = smul.addr %s921, 2
          %s923 = scalar_lea.vmem [#allocation3], %s922
          %924 = dma.done %s920, 32
        $region68: #{tpu_custom_call.1} parent=63 // pred_fallthru
          _
      $region64: #{tpu_custom_call.1} parent=5 // pred_fallthru
        _
    $region6: #{tpu_custom_call.1} parent=1 // loop_footer
      %s24 = sadd.s32 1, %s20
    $region7: #{tpu_custom_call.1} parent=1 // loop_footer_branch
      %19 = sbr.rel target = $region3
    $region8: #{tpu_custom_call.1} parent=1 // loop_exit
      _
    %925 = vsyncpa [#allocation4], 1
    %s926 = scalar_lea.sflag [#allocation4], 1
    %927 = vsyncpa %s926, 1

</llo_original>
